<compile_context>
chip_gen: v6e
topology: v6e:2x2x1
jax: 0.10.0
libtpu: 0.0.40
codegen_flags: <defaults>
</compile_context>

<pallas_src>
import jax
import jax.numpy as jnp
from jax import lax
from jax.experimental import pallas as pl
from jax.experimental.pallas import tpu as pltpu

F_IN = 2
F_HID = 16
F_OUT = 2
LANES = 128          # lane-dense output width / max edges incl. self-loops

# Packed static-slab row layout (single f32 VMEM operand, 128 lanes wide):
ROW_W1 = 0               # rows 0..1  : W1 (2, 16),  zero-padded lanes
ROW_B1 = 2               # row  2     : b1 (16,),    zero-padded lanes
ROW_W2 = 3               # rows 3..18 : W2 (16, 2),  zero-padded lanes
ROW_B2 = 3 + F_HID       # row  19    : b2 (2,),     zero-padded lanes
ROW_SRC = ROW_B2 + 1     # row  20    : edge sources (as f32), padded with -1
ROW_DST = ROW_SRC + 1    # row  21    : edge targets (as f32), padded with -1
N_ROWS = 24              # padded to a multiple of 8 sublanes


# --------------------------------------------------------------------------
# Pallas kernel: fused adjacency build + 2-layer GCN forward
# --------------------------------------------------------------------------
def gnn_kernel(x_ref, p_ref, out_ref):
    x = x_ref[...]                                   # (N, 2)    f32
    p = p_ref[...]                                   # (24, 128) f32
    n = x_ref.shape[0]

    # ---- build A_hat = D^{-1/2}(A + I)D^{-1/2} in VMEM from the edge list --
    src = p[ROW_SRC:ROW_SRC + 1, :].astype(jnp.int32)      # (1, 128), pad = -1
    dst = p[ROW_DST:ROW_DST + 1, :].astype(jnp.int32)      # (1, 128), pad = -1
    node = lax.broadcasted_iota(jnp.int32, (n, LANES), 0)  # node id per sublane
    st = (src == node).astype(jnp.float32)    # (N, E): st[j, e] = [src_e == j]
    dt = (dst == node).astype(jnp.float32)    # (N, E): dt[i, e] = [dst_e == i]

    deg = jnp.sum(dt, axis=1, keepdims=True)                     # (N, 1)
    dinv = jnp.where(deg > 0.0, lax.rsqrt(deg), 0.0)             # (N, 1), EUP
    norm = (jnp.sum(st * dinv, axis=0, keepdims=True)            # dinv[src_e]
            * jnp.sum(dt * dinv, axis=0, keepdims=True))         # dinv[dst_e]

    # adj[i, j] = sum_e dt[i, e] * norm[e] * st[j, e]   (MXU, contract over E;
    # padded edge slots have norm == 0 and all-zero one-hot columns)
    adj = lax.dot_general(dt * norm, st, (((1,), (1,)), ((), ())),
                          preferred_element_type=jnp.float32)    # (N, N)

    # ---- layer 1: relu(A_hat @ (X @ W1) + b1) ------------------------------
    h = jnp.dot(x, p[ROW_W1:ROW_W1 + F_IN, :F_HID],
                preferred_element_type=jnp.float32)              # (N, 16)
    h = jnp.dot(adj, h, preferred_element_type=jnp.float32)      # (N, 16)
    h = jnp.maximum(h + p[ROW_B1:ROW_B1 + 1, :F_HID], 0.0)

    # ---- layer 2 (reassociated): (A_hat @ H) @ W2 + b2 ---------------------
    o = jnp.dot(adj, h, preferred_element_type=jnp.float32)      # (N, 16)
    o = jnp.dot(o, p[ROW_W2:ROW_W2 + F_HID, :],
                preferred_element_type=jnp.float32)              # (N, 128)
    out_ref[...] = o + p[ROW_B2:ROW_B2 + 1, :]                   # dense vst


# --------------------------------------------------------------------------
# Wrapper: static parameter+edge slab and the pallas_call
# --------------------------------------------------------------------------
def pack_slab(w1, b1, w2, b2, edge_index, num_nodes):
    """Pack (W1, b1, W2, b2) and the self-loop-augmented edge list into a
    single zero-padded [24, 128] f32 slab (built once, reused every call)."""
    loop = jnp.arange(num_nodes, dtype=edge_index.dtype)
    src = jnp.concatenate([edge_index[0], loop])
    dst = jnp.concatenate([edge_index[1], loop])
    e_tot = int(src.shape[0])
    # TODO(synk): tile the edge list (scalar prefetch) once E + N > 128.
    assert e_tot <= LANES, "toy kernel assumes E + N <= 128"

    p = jnp.zeros((N_ROWS, LANES), jnp.float32)
    p = p.at[ROW_W1:ROW_W1 + F_IN, :F_HID].set(w1.astype(jnp.float32))
    p = p.at[ROW_B1, :F_HID].set(b1.reshape(-1).astype(jnp.float32))
    p = p.at[ROW_W2:ROW_W2 + F_HID, :w2.shape[1]].set(w2.astype(jnp.float32))
    p = p.at[ROW_B2, :b2.size].set(b2.reshape(-1).astype(jnp.float32))
    pad = jnp.full((LANES,), -1.0, jnp.float32)      # -1 never matches a node
    p = p.at[ROW_SRC].set(pad.at[:e_tot].set(src.astype(jnp.float32)))
    p = p.at[ROW_DST].set(pad.at[:e_tot].set(dst.astype(jnp.float32)))
    return p


def gnn_forward(x, slab):
    """Returns the lane-padded (N, 128) output; lanes >= F_OUT are exact
    zeros. Slice lazily in the consumer so XLA fuses it (no extra HBM pass
    dedicated to the slice)."""
    n = x.shape[0]
    vmem = pl.BlockSpec(memory_space=pltpu.MemorySpace.VMEM)
    flops = (2 * n * LANES * n           # adjacency build (N,E)@(E,N)
             + 2 * n * F_IN * F_HID      # X @ W1
             + 2 * n * n * F_HID         # A_hat @ (X W1)
             + 2 * n * n * F_HID         # A_hat @ H
             + 2 * n * F_HID * LANES)    # (A_hat H) @ W2 (padded to 128 lanes)
    bytes_accessed = 4 * (n * LANES          # x tile (lane-padded)
                          + N_ROWS * LANES   # param/edge slab
                          + n * LANES)       # output
    return pl.pallas_call(
        gnn_kernel,
        out_shape=jax.ShapeDtypeStruct((n, LANES), jnp.float32),
        in_specs=[vmem, vmem],
        out_specs=vmem,
        cost_estimate=pl.CostEstimate(
            flops=flops, transcendentals=n, bytes_accessed=bytes_accessed),
    )(x, slab)


# --------------------------------------------------------------------------
# Pure-JAX reference (for the correctness check only)
# --------------------------------------------------------------------------
def build_gcn_adj_ref(edge_index, num_nodes):
    src, dst = edge_index[0], edge_index[1]
    loop = jnp.arange(num_nodes, dtype=edge_index.dtype)
    src = jnp.concatenate([src, loop])
    dst = jnp.concatenate([dst, loop])
    deg = jnp.zeros((num_nodes,), jnp.float32).at[dst].add(1.0)
    dinv = jnp.where(deg > 0, 1.0 / jnp.sqrt(deg), 0.0)
    norm = dinv[src] * dinv[dst]
    return jnp.zeros((num_nodes, num_nodes), jnp.float32).at[dst, src].add(norm)


if __name__ == "__main__":
    key = jax.random.PRNGKey(0)
    k_x, k_w1, k_b1, k_w2, k_b2 = jax.random.split(key, 5)

    # Small deterministic graph: 8 nodes, ring + two chords (directed edges,
    # matching how PyG consumes list(G.edges) once per undirected edge).
    N = 8
    edges = [(0, 1), (1, 2), (2, 3), (3, 4), (4, 5), (5, 6), (6, 7), (7, 0),
             (0, 4), (2, 6)]
    edge_index = jnp.array(edges, dtype=jnp.int32).T          # (2, E)

    # Node features = 2-D positions (like G.nodes[node]['pos'])
    x = jax.random.uniform(k_x, (N, F_IN), dtype=jnp.float32)

    # Deterministic parameters, stored already transposed so the kernel
    # computes x @ W (PyG Linear weight is (out, in), applied as x @ W^T).
    w1 = jax.random.normal(k_w1, (F_IN, F_HID), dtype=jnp.float32) * 0.5
    b1 = jax.random.normal(k_b1, (1, F_HID), dtype=jnp.float32) * 0.1
    w2 = jax.random.normal(k_w2, (F_HID, F_OUT), dtype=jnp.float32) * 0.25
    b2 = jax.random.normal(k_b2, (1, F_OUT), dtype=jnp.float32) * 0.1

    slab = pack_slab(w1, b1, w2, b2, edge_index, N)   # static: params + edges

    fwd = jax.jit(gnn_forward)
    out_padded = jax.block_until_ready(fwd(x, slab))  # (N, 128), lane-dense
    out = out_padded[:, :F_OUT]                       # (N, 2)

    # Pure-JAX reference of the same math (dense scatter-built adjacency).
    adj_ref = build_gcn_adj_ref(edge_index, N)
    ref_h = jnp.maximum(adj_ref @ (x @ w1) + b1, 0.0)
    ref_o = adj_ref @ (ref_h @ w2) + b2
    assert out.shape == (N, F_OUT)
    assert jnp.allclose(out, ref_o, atol=1e-4, rtol=1e-4)

    print("KERNEL_OK")
</pallas_src>

<mosaic_0001>
module attributes {stable_mosaic.version = 11 : i64} {
  func.func @gnn_kernel(%arg0: memref<8x2xf32, #tpu.memory_space<vmem>>, %arg1: memref<24x128xf32, #tpu.memory_space<vmem>>, %arg2: memref<8x128xf32, #tpu.memory_space<vmem>>) attributes {dimension_semantics = [], scalar_prefetch = 0 : i64, scratch_operands = 0 : i64, tpu.core_type = #tpu.core_type<tc>} {
    %c0 = arith.constant 0 : index
    %c0_0 = arith.constant 0 : index
    %0 = vector.load %arg0[%c0, %c0_0] : memref<8x2xf32, #tpu.memory_space<vmem>>, vector<8x2xf32>
    %c0_1 = arith.constant 0 : index
    %c0_2 = arith.constant 0 : index
    %1 = vector.load %arg1[%c0_1, %c0_2] : memref<24x128xf32, #tpu.memory_space<vmem>>, vector<24x128xf32>
    %2 = vector.extract_strided_slice %1 {offsets = [20, 0], sizes = [1, 128], strides = [1, 1]} : vector<24x128xf32> to vector<1x128xf32>
    %3 = arith.fptosi %2 : vector<1x128xf32> to vector<1x128xi32>
    %4 = vector.extract_strided_slice %1 {offsets = [21, 0], sizes = [1, 128], strides = [1, 1]} : vector<24x128xf32> to vector<1x128xf32>
    %5 = arith.fptosi %4 : vector<1x128xf32> to vector<1x128xi32>
    %6 = tpu.iota {dimensions = array<i32: 0>} : vector<8x128xi32>
    %7 = vector.broadcast %3 : vector<1x128xi32> to vector<8x128xi32>
    %8 = arith.cmpi eq, %7, %6 : vector<8x128xi32>
    %9 = arith.extui %8 : vector<8x128xi1> to vector<8x128xi32>
    %10 = arith.sitofp %9 : vector<8x128xi32> to vector<8x128xf32>
    %11 = vector.broadcast %5 : vector<1x128xi32> to vector<8x128xi32>
    %12 = arith.cmpi eq, %11, %6 : vector<8x128xi32>
    %13 = arith.extui %12 : vector<8x128xi1> to vector<8x128xi32>
    %14 = arith.sitofp %13 : vector<8x128xi32> to vector<8x128xf32>
    %cst = arith.constant dense<0.000000e+00> : vector<8xf32>
    %15 = vector.multi_reduction <add>, %14, %cst [1] : vector<8x128xf32> to vector<8xf32>
    %16 = vector.shape_cast %15 : vector<8xf32> to vector<8x1xf32>
    %cst_3 = arith.constant 0.000000e+00 : f32
    %17 = vector.broadcast %cst_3 : f32 to vector<8x1xf32>
    %18 = arith.cmpf ogt, %16, %17 : vector<8x1xf32>
    %19 = math.rsqrt %16 : vector<8x1xf32>
    %cst_4 = arith.constant 0.000000e+00 : f32
    %20 = vector.broadcast %cst_4 : f32 to vector<8x1xf32>
    %21 = arith.select %18, %19, %20 : vector<8x1xi1>, vector<8x1xf32>
    %22 = vector.broadcast %21 : vector<8x1xf32> to vector<8x128xf32>
    %23 = arith.mulf %10, %22 : vector<8x128xf32>
    %cst_5 = arith.constant dense<0.000000e+00> : vector<128xf32>
    %24 = vector.multi_reduction <add>, %23, %cst_5 [0] : vector<8x128xf32> to vector<128xf32>
    %25 = vector.shape_cast %24 : vector<128xf32> to vector<1x128xf32>
    %26 = vector.broadcast %21 : vector<8x1xf32> to vector<8x128xf32>
    %27 = arith.mulf %14, %26 : vector<8x128xf32>
    %cst_6 = arith.constant dense<0.000000e+00> : vector<128xf32>
    %28 = vector.multi_reduction <add>, %27, %cst_6 [0] : vector<8x128xf32> to vector<128xf32>
    %29 = vector.shape_cast %28 : vector<128xf32> to vector<1x128xf32>
    %30 = arith.mulf %25, %29 : vector<1x128xf32>
    %31 = vector.broadcast %30 : vector<1x128xf32> to vector<8x128xf32>
    %32 = arith.mulf %14, %31 : vector<8x128xf32>
    %cst_7 = arith.constant dense<0.000000e+00> : vector<8x8xf32>
    %33 = tpu.matmul %32, %10, %cst_7 {dimension_numbers = #tpu.dot_dimension_numbers<[1], [1], [0], [0], [0, 0, 1, 0], [], []>} : vector<8x128xf32>, vector<8x128xf32>, vector<8x8xf32> -> vector<8x8xf32>
    %34 = vector.extract_strided_slice %1 {offsets = [0, 0], sizes = [2, 16], strides = [1, 1]} : vector<24x128xf32> to vector<2x16xf32>
    %cst_8 = arith.constant dense<0.000000e+00> : vector<8x16xf32>
    %35 = tpu.matmul %0, %34, %cst_8 {dimension_numbers = #tpu.dot_dimension_numbers<[1], [0], [0], [1], [0, 0, 1, 1], [], []>} : vector<8x2xf32>, vector<2x16xf32>, vector<8x16xf32> -> vector<8x16xf32>
    %cst_9 = arith.constant dense<0.000000e+00> : vector<8x16xf32>
    %36 = tpu.matmul %33, %35, %cst_9 {dimension_numbers = #tpu.dot_dimension_numbers<[1], [0], [0], [1], [0, 0, 1, 1], [], []>} : vector<8x8xf32>, vector<8x16xf32>, vector<8x16xf32> -> vector<8x16xf32>
    %37 = vector.extract_strided_slice %1 {offsets = [2, 0], sizes = [1, 16], strides = [1, 1]} : vector<24x128xf32> to vector<1x16xf32>
    %38 = vector.broadcast %37 : vector<1x16xf32> to vector<8x16xf32>
    %39 = arith.addf %36, %38 : vector<8x16xf32>
    %cst_10 = arith.constant 0.000000e+00 : f32
    %40 = vector.broadcast %cst_10 : f32 to vector<8x16xf32>
    %41 = arith.maximumf %39, %40 : vector<8x16xf32>
    %cst_11 = arith.constant dense<0.000000e+00> : vector<8x16xf32>
    %42 = tpu.matmul %33, %41, %cst_11 {dimension_numbers = #tpu.dot_dimension_numbers<[1], [0], [0], [1], [0, 0, 1, 1], [], []>} : vector<8x8xf32>, vector<8x16xf32>, vector<8x16xf32> -> vector<8x16xf32>
    %43 = vector.extract_strided_slice %1 {offsets = [3, 0], sizes = [16, 128], strides = [1, 1]} : vector<24x128xf32> to vector<16x128xf32>
    %cst_12 = arith.constant dense<0.000000e+00> : vector<8x128xf32>
    %44 = tpu.matmul %42, %43, %cst_12 {dimension_numbers = #tpu.dot_dimension_numbers<[1], [0], [0], [1], [0, 0, 1, 1], [], []>} : vector<8x16xf32>, vector<16x128xf32>, vector<8x128xf32> -> vector<8x128xf32>
    %45 = vector.extract_strided_slice %1 {offsets = [19, 0], sizes = [1, 128], strides = [1, 1]} : vector<24x128xf32> to vector<1x128xf32>
    %46 = vector.broadcast %45 : vector<1x128xf32> to vector<8x128xf32>
    %47 = arith.addf %44, %46 : vector<8x128xf32>
    %c0_13 = arith.constant 0 : index
    %c0_14 = arith.constant 0 : index
    %48 = vector.load %arg2[%c0_13, %c0_14] : memref<8x128xf32, #tpu.memory_space<vmem>>, vector<8x128xf32>
    tpu.vector_store %arg2[%c0_13, %c0_14], %47 {strides = array<i32>} : memref<8x128xf32, #tpu.memory_space<vmem>>, vector<8x128xf32>,
    return
  }
}

</mosaic_0001>

<llo_original>
// kernel: gnn_forward.1
$region0: #{gnn_forward.1}
  #allocation0 [shape = 'u32[]', space=smem, size = 0x4, offset = 0x4, fixed_abs, tag = 'smem constant byte address 0x4 - core index']
  #allocation1 [shape = 'u32[144,128]{1,0:T(1,128)}', space=vmem, size = 0x12000, scoped, tag = 'internal scratch']
  %s0 = inlined_call_operand.vmem [shape: f32[8,2], index: 0, kind: input, shape index: {}]
  %s1 = inlined_call_operand.hbm [shape: f32[24,128], index: 1, kind: input, shape index: {}]
  %s2 = inlined_call_operand.hbm [shape: f32[8,128], index: 2, kind: output, shape index: {}]
  %s3 = sld [smem:[#allocation0]]
  $region22: #{gnn_forward.1} parent=0
    _
  %s5 = ssub.s32 1, %s3
  %s6 = scalar_select 0, %s5, %s3
  $region1: #{gnn_forward.1} parent=0
    #allocation2 [shape = 'u8[12288]{0}', space=vmem, size = 0x3000, scoped, tag = 'input window, operand 1, single buffered']
    #allocation3 [shape = 's32[1]{0}', space=sflag, size = 0x4, scoped, tag = 'scoped memory for gnn_forward.1']
    #allocation4 [shape = 's32[1]{0}', space=sflag, size = 0x4, scoped, tag = 'scoped memory for gnn_forward.1']
    #allocation5 [shape = 'u8[4096]{0}', space=vmem, size = 0x1000, scoped, tag = 'output window, operand 0, single buffered']
    %7 = vsyncpa [#allocation3], 0
    %8 = vsyncpa [#allocation4], 0
    // Predicated region
    $region2: #{gnn_forward.1} parent=1 // pred_check
      _
    $region3: #{gnn_forward.1} parent=1 // pred_check_branch
      %10 = sbr.rel (0) target = $region5
    $region4: #{gnn_forward.1} parent=1 // pred_region
      _
    $region5: #{gnn_forward.1} parent=1 // pred_fallthru
      _
    // Predicated region
    $region6: #{gnn_forward.1} parent=1 // pred_check
      _
    $region7: #{gnn_forward.1} parent=1 // pred_check_branch
      %12 = sbr.rel (0) target = $region9
    $region8: #{gnn_forward.1} parent=1 // pred_region
      %s14 = ssub.s32 384, 384
      %15 = vsyncadd [#allocation3], %s14
      %s16 = sshll.u32 [#allocation2], 4
      %s17 = int_to_ptr.vmem [resolvable:$true] %s16
      %22 = dma.hbm_to_vmem [thread:$0]  %s1, 384, %s17, [#allocation3], 128, 128, 8
    $region9: #{gnn_forward.1} parent=1 // pred_fallthru
      _
    // Predicated region
    $region10: #{gnn_forward.1} parent=1 // pred_check
      _
    $region11: #{gnn_forward.1} parent=1 // pred_check_branch
      %24 = sbr.rel (0) target = $region13
    $region12: #{gnn_forward.1} parent=1 // pred_region
      %25 = dma.done [#allocation3], 384
    $region13: #{gnn_forward.1} parent=1 // pred_fallthru
      _
    %v26 = vld [vmem:[%s0] sm:$0xff]
    %v27 = vld [vmem:[#allocation2] sm:$0xff]
    %v28 = vld [vmem:[#allocation2 + $0x8] sm:$0xff]
    %v29 = vld [vmem:[#allocation2 + $0x10] sm:$0xff]
    %v30 = vcvt.f32.s32.to.zero.pseudo %v29
    %v31 = vlaneseq
    %v32 = vshrl.u32 %v31, 7
    %v33 = vlaneseq
    %v34 = vshrl.u32 %v33, 7
    %v35 = vsub.s32 4, %v34
    %v36 = vrot.slane %v30, %v35
    %vm37 = vcmp.eq.s32.totalorder %v36, %v32
    %v38 = vsel %vm37, 1, 0
    %v39 = vcvt.s32.f32 %v38
    %v40 = vlaneseq
    %v41 = vshrl.u32 %v40, 7
    %v42 = vsub.s32 5, %v41
    %v43 = vrot.slane %v30, %v42
    %vm44 = vcmp.eq.s32.totalorder %v43, %v32
    %v45 = vsel %vm44, 1, 0
    %v46 = vcvt.s32.f32 %v45
    %47 = vadd.xlane.f32.xlu0 %v46
    %v48 = vpop.xlane.xlu0 %47
    %vm49 = vcmp.gt.f32.partialorder %v48, 0.0
    %v50 = vrsqrt.pop %v48
    %v51 = vsel %vm49, %v50, 0.0
    %v52 = vmul.f32 %v39, %v51
    %v53 = vrot.slane %v52, 4
    %v54 = vadd.f32 %v52, %v53
    %v55 = vrot.slane %v54, 2
    %v56 = vadd.f32 %v54, %v55
    %v57 = vrot.slane %v56, 1
    %v58 = vadd.f32 %v56, %v57
    %v59 = vmul.f32 %v46, %v51
    %v60 = vrot.slane %v59, 4
    %v61 = vadd.f32 %v59, %v60
    %v62 = vrot.slane %v61, 2
    %v63 = vadd.f32 %v61, %v62
    %v64 = vrot.slane %v63, 1
    %v65 = vadd.f32 %v63, %v64
    %v66 = vmul.f32 %v58, %v65
    %v67 = vmul.f32 %v46, %v66
    %68 = vmatprep.subr.mxu0 0.0
    %69 = vmatpush1.xpose.msra.mxu0 0.0
    %70 = vmatprep.subr.mxu0 0.0
    %71 = vmatpush1.xpose.msra.mxu0 0.0
    %72 = vmatprep.subr.mxu0 0.0
    %73 = vmatpush1.xpose.msra.mxu0 0.0
    %74 = vmatprep.subr.mxu0 0.0
    %75 = vmatpush1.xpose.msra.mxu0 0.0
    %76 = vmatprep.subr.mxu0 0.0
    %77 = vmatpush1.xpose.msra.mxu0 0.0
    %78 = vmatprep.subr.mxu0 0.0
    %79 = vmatpush1.xpose.msra.mxu0 0.0
    %80 = vmatprep.subr.mxu0 0.0
    %81 = vmatpush1.xpose.msra.mxu0 0.0
    %82 = vmatprep.subr.mxu0 0.0
    %83 = vmatpush1.xpose.msra.mxu0 0.0
    %84 = vmatprep.subr.mxu0 0.0
    %85 = vmatpush1.xpose.msra.mxu0 0.0
    %86 = vmatprep.subr.mxu0 0.0
    %87 = vmatpush1.xpose.msra.mxu0 0.0
    %88 = vmatprep.subr.mxu0 0.0
    %89 = vmatpush1.xpose.msra.mxu0 0.0
    %90 = vmatprep.subr.mxu0 0.0
    %91 = vmatpush1.xpose.msra.mxu0 0.0
    %92 = vmatprep.subr.mxu0 0.0
    %93 = vmatpush1.xpose.msra.mxu0 0.0
    %94 = vmatprep.subr.mxu0 0.0
    %95 = vmatpush1.xpose.msra.mxu0 0.0
    %96 = vmatprep.subr.mxu0 0.0
    %97 = vmatpush1.xpose.msra.mxu0 0.0
    %98 = vmatprep.subr.mxu0 0.0
    %99 = vmatpush1.xpose.msra.mxu0 %v39
    %100 = vmatprep.subr.mxu0 0.0
    %101 = vmatpush2.xpose.msra.mxu0 0.0
    %102 = vmatprep.subr.mxu0 0.0
    %103 = vmatpush2.xpose.msra.mxu0 0.0
    %104 = vmatprep.subr.mxu0 0.0
    %105 = vmatpush2.xpose.msra.mxu0 0.0
    %106 = vmatprep.subr.mxu0 0.0
    %107 = vmatpush2.xpose.msra.mxu0 0.0
    %108 = vmatprep.subr.mxu0 0.0
    %109 = vmatpush2.xpose.msra.mxu0 0.0
    %110 = vmatprep.subr.mxu0 0.0
    %111 = vmatpush2.xpose.msra.mxu0 0.0
    %112 = vmatprep.subr.mxu0 0.0
    %113 = vmatpush2.xpose.msra.mxu0 0.0
    %114 = vmatprep.subr.mxu0 0.0
    %115 = vmatpush2.xpose.msra.mxu0 0.0
    %116 = vmatprep.subr.mxu0 0.0
    %117 = vmatpush2.xpose.msra.mxu0 0.0
    %118 = vmatprep.subr.mxu0 0.0
    %119 = vmatpush2.xpose.msra.mxu0 0.0
    %120 = vmatprep.subr.mxu0 0.0
    %121 = vmatpush2.xpose.msra.mxu0 0.0
    %122 = vmatprep.subr.mxu0 0.0
    %123 = vmatpush2.xpose.msra.mxu0 0.0
    %124 = vmatprep.subr.mxu0 0.0
    %125 = vmatpush2.xpose.msra.mxu0 0.0
    %126 = vmatprep.subr.mxu0 0.0
    %127 = vmatpush2.xpose.msra.mxu0 0.0
    %128 = vmatprep.subr.mxu0 0.0
    %129 = vmatpush2.xpose.msra.mxu0 0.0
    %130 = vmatprep.subr.mxu0 0.0
    %131 = vmatpush2.xpose.msra.mxu0 0.0
    %132 = vmatprep.mubr.f32.mxu0 0.0
    %133 = vmatmul.mubr.f32.gmra.mxu0 %v67
    %v134 = vpop.f32.mrf.mxu0
    %v135 = vadd.f32 0.0, %v134
    %v136 = vpop.f32.mrf.mxu0
    %137 = vdwg.mxu0
    %vm138 = vcmask 15360
    %v140 = vsel %vm138, %v26, 0
    %vm142 = vcmask 1041408
    %v144 = vsel %vm142, %v27, 0
    %146 = vmatprep.subr.mxu0 0.0
    %147 = vmatpush1.msra.mxu0 0.0
    %148 = vmatprep.subr.mxu0 0.0
    %149 = vmatpush1.msra.mxu0 0.0
    %150 = vmatprep.subr.mxu0 0.0
    %151 = vmatpush1.msra.mxu0 0.0
    %152 = vmatprep.subr.mxu0 0.0
    %153 = vmatpush1.msra.mxu0 0.0
    %154 = vmatprep.subr.mxu0 0.0
    %155 = vmatpush1.msra.mxu0 0.0
    %156 = vmatprep.subr.mxu0 0.0
    %157 = vmatpush1.msra.mxu0 0.0
    %158 = vmatprep.subr.mxu0 0.0
    %159 = vmatpush1.msra.mxu0 0.0
    %160 = vmatprep.subr.mxu0 0.0
    %161 = vmatpush1.msra.mxu0 0.0
    %162 = vmatprep.subr.mxu0 0.0
    %163 = vmatpush1.msra.mxu0 0.0
    %164 = vmatprep.subr.mxu0 0.0
    %165 = vmatpush1.msra.mxu0 0.0
    %166 = vmatprep.subr.mxu0 0.0
    %167 = vmatpush1.msra.mxu0 0.0
    %168 = vmatprep.subr.mxu0 0.0
    %169 = vmatpush1.msra.mxu0 0.0
    %170 = vmatprep.subr.mxu0 0.0
    %171 = vmatpush1.msra.mxu0 0.0
    %172 = vmatprep.subr.mxu0 0.0
    %173 = vmatpush1.msra.mxu0 0.0
    %174 = vmatprep.subr.mxu0 0.0
    %175 = vmatpush1.msra.mxu0 0.0
    %176 = vmatprep.subr.mxu0 0.0
    %177 = vmatpush1.msra.mxu0 %v144
    %178 = vmatprep.subr.mxu0 0.0
    %179 = vmatpush2.msra.mxu0 0.0
    %180 = vmatprep.subr.mxu0 0.0
    %181 = vmatpush2.msra.mxu0 0.0
    %182 = vmatprep.subr.mxu0 0.0
    %183 = vmatpush2.msra.mxu0 0.0
    %184 = vmatprep.subr.mxu0 0.0
    %185 = vmatpush2.msra.mxu0 0.0
    %186 = vmatprep.subr.mxu0 0.0
    %187 = vmatpush2.msra.mxu0 0.0
    %188 = vmatprep.subr.mxu0 0.0
    %189 = vmatpush2.msra.mxu0 0.0
    %190 = vmatprep.subr.mxu0 0.0
    %191 = vmatpush2.msra.mxu0 0.0
    %192 = vmatprep.subr.mxu0 0.0
    %193 = vmatpush2.msra.mxu0 0.0
    %194 = vmatprep.subr.mxu0 0.0
    %195 = vmatpush2.msra.mxu0 0.0
    %196 = vmatprep.subr.mxu0 0.0
    %197 = vmatpush2.msra.mxu0 0.0
    %198 = vmatprep.subr.mxu0 0.0
    %199 = vmatpush2.msra.mxu0 0.0
    %200 = vmatprep.subr.mxu0 0.0
    %201 = vmatpush2.msra.mxu0 0.0
    %202 = vmatprep.subr.mxu0 0.0
    %203 = vmatpush2.msra.mxu0 0.0
    %204 = vmatprep.subr.mxu0 0.0
    %205 = vmatpush2.msra.mxu0 0.0
    %206 = vmatprep.subr.mxu0 0.0
    %207 = vmatpush2.msra.mxu0 0.0
    %208 = vmatprep.subr.mxu0 0.0
    %209 = vmatpush2.msra.mxu0 0.0
    %210 = vmatprep.mubr.f32.mxu0 0.0
    %211 = vmatmul.mubr.f32.gmra.mxu0 %v140
    %v212 = vpop.f32.mrf.mxu0
    %v213 = vadd.f32 0.0, %v212
    %v214 = vpop.f32.mrf.mxu0
    %215 = vdwg.mxu0
    %v216 = vlaneseq
    %v217 = vshrl.u32 %v216, 7
    %v218 = vsub.s32 2, %v217
    %v219 = vrot.slane %v27, %v218
    %vm220 = vcmask 64512
    %v222 = vsel %vm220, %v135, 0
    %224 = vmatprep.subr.mxu0 0.0
    %225 = vmatpush1.msra.mxu0 0.0
    %226 = vmatprep.subr.mxu0 0.0
    %227 = vmatpush1.msra.mxu0 0.0
    %228 = vmatprep.subr.mxu0 0.0
    %229 = vmatpush1.msra.mxu0 0.0
    %230 = vmatprep.subr.mxu0 0.0
    %231 = vmatpush1.msra.mxu0 0.0
    %232 = vmatprep.subr.mxu0 0.0
    %233 = vmatpush1.msra.mxu0 0.0
    %234 = vmatprep.subr.mxu0 0.0
    %235 = vmatpush1.msra.mxu0 0.0
    %236 = vmatprep.subr.mxu0 0.0
    %237 = vmatpush1.msra.mxu0 0.0
    %238 = vmatprep.subr.mxu0 0.0
    %239 = vmatpush1.msra.mxu0 0.0
    %240 = vmatprep.subr.mxu0 0.0
    %241 = vmatpush1.msra.mxu0 0.0
    %242 = vmatprep.subr.mxu0 0.0
    %243 = vmatpush1.msra.mxu0 0.0
    %244 = vmatprep.subr.mxu0 0.0
    %245 = vmatpush1.msra.mxu0 0.0
    %246 = vmatprep.subr.mxu0 0.0
    %247 = vmatpush1.msra.mxu0 0.0
    %248 = vmatprep.subr.mxu0 0.0
    %249 = vmatpush1.msra.mxu0 0.0
    %250 = vmatprep.subr.mxu0 0.0
    %251 = vmatpush1.msra.mxu0 0.0
    %252 = vmatprep.subr.mxu0 0.0
    %253 = vmatpush1.msra.mxu0 0.0
    %254 = vmatprep.subr.mxu0 0.0
    %255 = vmatpush1.msra.mxu0 %v213
    %256 = vmatprep.subr.mxu0 0.0
    %257 = vmatpush2.msra.mxu0 0.0
    %258 = vmatprep.subr.mxu0 0.0
    %259 = vmatpush2.msra.mxu0 0.0
    %260 = vmatprep.subr.mxu0 0.0
    %261 = vmatpush2.msra.mxu0 0.0
    %262 = vmatprep.subr.mxu0 0.0
    %263 = vmatpush2.msra.mxu0 0.0
    %264 = vmatprep.subr.mxu0 0.0
    %265 = vmatpush2.msra.mxu0 0.0
    %266 = vmatprep.subr.mxu0 0.0
    %267 = vmatpush2.msra.mxu0 0.0
    %268 = vmatprep.subr.mxu0 0.0
    %269 = vmatpush2.msra.mxu0 0.0
    %270 = vmatprep.subr.mxu0 0.0
    %271 = vmatpush2.msra.mxu0 0.0
    %272 = vmatprep.subr.mxu0 0.0
    %273 = vmatpush2.msra.mxu0 0.0
    %274 = vmatprep.subr.mxu0 0.0
    %275 = vmatpush2.msra.mxu0 0.0
    %276 = vmatprep.subr.mxu0 0.0
    %277 = vmatpush2.msra.mxu0 0.0
    %278 = vmatprep.subr.mxu0 0.0
    %279 = vmatpush2.msra.mxu0 0.0
    %280 = vmatprep.subr.mxu0 0.0
    %281 = vmatpush2.msra.mxu0 0.0
    %282 = vmatprep.subr.mxu0 0.0
    %283 = vmatpush2.msra.mxu0 0.0
    %284 = vmatprep.subr.mxu0 0.0
    %285 = vmatpush2.msra.mxu0 0.0
    %286 = vmatprep.subr.mxu0 0.0
    %287 = vmatpush2.msra.mxu0 0.0
    %288 = vmatprep.mubr.f32.mxu0 0.0
    %289 = vmatmul.mubr.f32.gmra.mxu0 %v222
    %v290 = vpop.f32.mrf.mxu0
    %v291 = vadd.f32 %v219, %v290
    %v292 = vpop.f32.mrf.mxu0
    %293 = vdwg.mxu0
    %v294 = vmax.f32 %v291, 0.0
    %295 = vmatprep.subr.mxu0 0.0
    %296 = vmatpush1.msra.mxu0 0.0
    %297 = vmatprep.subr.mxu0 0.0
    %298 = vmatpush1.msra.mxu0 0.0
    %299 = vmatprep.subr.mxu0 0.0
    %300 = vmatpush1.msra.mxu0 0.0
    %301 = vmatprep.subr.mxu0 0.0
    %302 = vmatpush1.msra.mxu0 0.0
    %303 = vmatprep.subr.mxu0 0.0
    %304 = vmatpush1.msra.mxu0 0.0
    %305 = vmatprep.subr.mxu0 0.0
    %306 = vmatpush1.msra.mxu0 0.0
    %307 = vmatprep.subr.mxu0 0.0
    %308 = vmatpush1.msra.mxu0 0.0
    %309 = vmatprep.subr.mxu0 0.0
    %310 = vmatpush1.msra.mxu0 0.0
    %311 = vmatprep.subr.mxu0 0.0
    %312 = vmatpush1.msra.mxu0 0.0
    %313 = vmatprep.subr.mxu0 0.0
    %314 = vmatpush1.msra.mxu0 0.0
    %315 = vmatprep.subr.mxu0 0.0
    %316 = vmatpush1.msra.mxu0 0.0
    %317 = vmatprep.subr.mxu0 0.0
    %318 = vmatpush1.msra.mxu0 0.0
    %319 = vmatprep.subr.mxu0 0.0
    %320 = vmatpush1.msra.mxu0 0.0
    %321 = vmatprep.subr.mxu0 0.0
    %322 = vmatpush1.msra.mxu0 0.0
    %323 = vmatprep.subr.mxu0 0.0
    %324 = vmatpush1.msra.mxu0 0.0
    %325 = vmatprep.subr.mxu0 0.0
    %326 = vmatpush1.msra.mxu0 %v294
    %327 = vmatprep.subr.mxu0 0.0
    %328 = vmatpush2.msra.mxu0 0.0
    %329 = vmatprep.subr.mxu0 0.0
    %330 = vmatpush2.msra.mxu0 0.0
    %331 = vmatprep.subr.mxu0 0.0
    %332 = vmatpush2.msra.mxu0 0.0
    %333 = vmatprep.subr.mxu0 0.0
    %334 = vmatpush2.msra.mxu0 0.0
    %335 = vmatprep.subr.mxu0 0.0
    %336 = vmatpush2.msra.mxu0 0.0
    %337 = vmatprep.subr.mxu0 0.0
    %338 = vmatpush2.msra.mxu0 0.0
    %339 = vmatprep.subr.mxu0 0.0
    %340 = vmatpush2.msra.mxu0 0.0
    %341 = vmatprep.subr.mxu0 0.0
    %342 = vmatpush2.msra.mxu0 0.0
    %343 = vmatprep.subr.mxu0 0.0
    %344 = vmatpush2.msra.mxu0 0.0
    %345 = vmatprep.subr.mxu0 0.0
    %346 = vmatpush2.msra.mxu0 0.0
    %347 = vmatprep.subr.mxu0 0.0
    %348 = vmatpush2.msra.mxu0 0.0
    %349 = vmatprep.subr.mxu0 0.0
    %350 = vmatpush2.msra.mxu0 0.0
    %351 = vmatprep.subr.mxu0 0.0
    %352 = vmatpush2.msra.mxu0 0.0
    %353 = vmatprep.subr.mxu0 0.0
    %354 = vmatpush2.msra.mxu0 0.0
    %355 = vmatprep.subr.mxu0 0.0
    %356 = vmatpush2.msra.mxu0 0.0
    %357 = vmatprep.subr.mxu0 0.0
    %358 = vmatpush2.msra.mxu0 0.0
    %359 = vmatprep.mubr.f32.mxu0 0.0
    %360 = vmatmul.mubr.f32.gmra.mxu0 %v222
    %v361 = vpop.f32.mrf.mxu0
    %v362 = vadd.f32 0.0, %v361
    %v363 = vpop.f32.mrf.mxu0
    %364 = vdwg.mxu0
    %v365 = vlaneseq
    %v366 = vshrl.u32 %v365, 7
    %v367 = vsub.s32 3, %v366
    %v368 = vrot.slane %v29, %v367
    %vm371 = vcmask 1044480
    %v372 = vrot.slane %v27, 3
    %v373 = vrot.slane %v28, 3
    %v374 = vsel %vm371, %v372, %v373
    %v375 = vrot.slane %v29, 3
    %v376 = vsel %vm371, %v373, %v375
    %vm379 = vcmask 130048
    %v381 = vsel %vm379, %v362, 0
    %383 = vmatprep.subr.mxu0 0.0
    %384 = vmatpush1.msra.mxu0 0.0
    %385 = vmatprep.subr.mxu0 0.0
    %386 = vmatpush1.msra.mxu0 0.0
    %387 = vmatprep.subr.mxu0 0.0
    %388 = vmatpush1.msra.mxu0 0.0
    %389 = vmatprep.subr.mxu0 0.0
    %390 = vmatpush1.msra.mxu0 0.0
    %391 = vmatprep.subr.mxu0 0.0
    %392 = vmatpush1.msra.mxu0 0.0
    %393 = vmatprep.subr.mxu0 0.0
    %394 = vmatpush1.msra.mxu0 0.0
    %395 = vmatprep.subr.mxu0 0.0
    %396 = vmatpush1.msra.mxu0 0.0
    %397 = vmatprep.subr.mxu0 0.0
    %398 = vmatpush1.msra.mxu0 0.0
    %399 = vmatprep.subr.mxu0 0.0
    %400 = vmatpush1.msra.mxu0 0.0
    %401 = vmatprep.subr.mxu0 0.0
    %402 = vmatpush1.msra.mxu0 0.0
    %403 = vmatprep.subr.mxu0 0.0
    %404 = vmatpush1.msra.mxu0 0.0
    %405 = vmatprep.subr.mxu0 0.0
    %406 = vmatpush1.msra.mxu0 0.0
    %407 = vmatprep.subr.mxu0 0.0
    %408 = vmatpush1.msra.mxu0 0.0
    %409 = vmatprep.subr.mxu0 0.0
    %410 = vmatpush1.msra.mxu0 0.0
    %411 = vmatprep.subr.mxu0 0.0
    %412 = vmatpush1.msra.mxu0 %v376
    %413 = vmatprep.subr.mxu0 0.0
    %414 = vmatpush1.msra.mxu0 %v374
    %415 = vmatprep.subr.mxu0 0.0
    %416 = vmatpush2.msra.mxu0 0.0
    %417 = vmatprep.subr.mxu0 0.0
    %418 = vmatpush2.msra.mxu0 0.0
    %419 = vmatprep.subr.mxu0 0.0
    %420 = vmatpush2.msra.mxu0 0.0
    %421 = vmatprep.subr.mxu0 0.0
    %422 = vmatpush2.msra.mxu0 0.0
    %423 = vmatprep.subr.mxu0 0.0
    %424 = vmatpush2.msra.mxu0 0.0
    %425 = vmatprep.subr.mxu0 0.0
    %426 = vmatpush2.msra.mxu0 0.0
    %427 = vmatprep.subr.mxu0 0.0
    %428 = vmatpush2.msra.mxu0 0.0
    %429 = vmatprep.subr.mxu0 0.0
    %430 = vmatpush2.msra.mxu0 0.0
    %431 = vmatprep.subr.mxu0 0.0
    %432 = vmatpush2.msra.mxu0 0.0
    %433 = vmatprep.subr.mxu0 0.0
    %434 = vmatpush2.msra.mxu0 0.0
    %435 = vmatprep.subr.mxu0 0.0
    %436 = vmatpush2.msra.mxu0 0.0
    %437 = vmatprep.subr.mxu0 0.0
    %438 = vmatpush2.msra.mxu0 0.0
    %439 = vmatprep.subr.mxu0 0.0
    %440 = vmatpush2.msra.mxu0 0.0
    %441 = vmatprep.subr.mxu0 0.0
    %442 = vmatpush2.msra.mxu0 0.0
    %443 = vmatprep.subr.mxu0 0.0
    %444 = vmatpush2.msra.mxu0 0.0
    %445 = vmatprep.subr.mxu0 0.0
    %446 = vmatpush2.msra.mxu0 0.0
    %447 = vmatprep.mubr.f32.mxu0 0.0
    %448 = vmatmul.mubr.f32.gmra.mxu0 %v381
    %v449 = vpop.f32.mrf.mxu0
    %v450 = vadd.f32 %v368, %v449
    %v451 = vpop.f32.mrf.mxu0
    %452 = vdwg.mxu0
    %453 = vst [vmem:[#allocation5] sm:$0xff] %v450
    // Predicated region
    $region14: #{gnn_forward.1} parent=1 // pred_check
      _
    $region15: #{gnn_forward.1} parent=1 // pred_check_branch
      %455 = sbr.rel (0) target = $region17
    $region16: #{gnn_forward.1} parent=1 // pred_region
      %s457 = ssub.s32 128, 128
      %458 = vsyncadd [#allocation4], %s457
      %s460 = sshll.u32 [#allocation5], 4
      %s461 = int_to_ptr.vmem [resolvable:$true] %s460
      %463 = dma.vmem_to_hbm [thread:$0]  %s461, 128, %s2, [#allocation4]
    $region17: #{gnn_forward.1} parent=1 // pred_fallthru
      _
    // Predicated region
    $region18: #{gnn_forward.1} parent=1 // pred_check
      _
    $region19: #{gnn_forward.1} parent=1 // pred_check_branch
      %465 = sbr.rel (0) target = $region21
    $region20: #{gnn_forward.1} parent=1 // pred_region
      %466 = dma.done [#allocation4], 128
    $region21: #{gnn_forward.1} parent=1 // pred_fallthru
      _
    %467 = vsyncpa [#allocation3], 1
    %468 = vsyncpa [#allocation4], 1

</llo_original>
